<compile_context>
chip_gen: v5e
topology: v5e:2x2
jax: 0.10.0
libtpu: 0.0.40
codegen_flags: <defaults>
</compile_context>

<pallas_src>
import functools

import jax
import jax.numpy as jnp
import numpy as np
from jax.experimental import pallas as pl
from jax.experimental.pallas import tpu as pltpu


# ----------------------------------------------------------------------------
# Kernel
# ----------------------------------------------------------------------------
def _conv2d_block_kernel(x_ref, w_ref, b_ref, o_ref, xpad_ref, *,
                         KH, OH, OW, OC, stride, padding):
    """One grid step = Bt batch images.

    x_ref:    (Bt, Cin, H, W)        native NCHW input block (input dtype)
    w_ref:    (Cin, KH, W, OW*OC)    Toeplitz-expanded weights (compute dtype)
    b_ref:    (1, OW*OC)             bias tiled over OW (f32)
    o_ref:    (Bt, OH, OW*OC)        lane-dense output (f32)
    xpad_ref: (Bt, Cin, Hp, W)       VMEM scratch, H-zero-padded input
    """
    Bt, Cin, H, W = x_ref.shape
    Hp = H + 2 * padding
    OWOC = OW * OC
    rows = Bt * OH

    if padding > 0:
        # Fused ZeroPad2d (H direction): zero the halo rows, copy the interior.
        # The W-direction halo is already folded into the Toeplitz weights.
        halo = jnp.zeros((Bt, Cin, padding, W), dtype=xpad_ref.dtype)
        xpad_ref[:, :, 0:padding, :] = halo
        xpad_ref[:, :, Hp - padding:Hp, :] = halo
        xpad_ref[:, :, padding:padding + H, :] = x_ref[...].astype(xpad_ref.dtype)
        src = xpad_ref
    else:
        src = x_ref

    # Cin*KH small matmuls, fully unrolled (short static loops).
    acc = None
    for c in range(Cin):
        for kh in range(KH):
            if stride == 1:
                slab = src[:, c, kh:kh + OH, :]                 # (Bt, OH, W)
            else:
                # Strided ref read straight from VMEM (no materialized slab).
                slab = src[:, c, pl.ds(kh, OH, stride=stride), :]
            lhs = slab.reshape(rows, W).astype(w_ref.dtype)
            part = jnp.dot(lhs, w_ref[c, kh],
                           preferred_element_type=jnp.float32)
            acc = part if acc is None else acc + part           # init from 1st dot

    out = jnp.maximum(acc + b_ref[...], 0.0)                    # bias + ReLU in f32
    # norm='none' -> no normalization (matches default Conv2dBlock).
    o_ref[...] = out.reshape(Bt, OH, OWOC).astype(o_ref.dtype)


# ----------------------------------------------------------------------------
# Heuristics (generation-aware VMEM budget / batch block)
# ----------------------------------------------------------------------------
def _tpu_vmem_capacity():
    try:
        return int(pltpu.get_tpu_info().vmem_capacity_bytes)
    except Exception:
        return None        # unknown: be conservative (assume the smaller v7x VMEM)


def _vmem_budget_bytes(vmem_cap_bytes):
    cap = vmem_cap_bytes if vmem_cap_bytes is not None else 64 * 1024 * 1024
    # ~3/8 of physical VMEM for our tiles: ~24 MiB on v7x (64 MiB VMEM),
    # ~48 MiB on v5e/v6e (128 MiB); leaves headroom for Mosaic-internal scratch.
    return int(max(8 * 1024 * 1024, min(48 * 1024 * 1024, (3 * cap) // 8)))


def _pick_batch_block(B, OH, per_img_in, per_img_out, per_img_scratch,
                      resident_bytes, budget_bytes, vmem_cap_bytes):
    """Largest batch block whose footprint (double-buffered in/out tiles +
    resident weights/bias + padded scratch) fits the budget."""
    per_img = 2 * per_img_in + 2 * per_img_out + per_img_scratch
    divisors = [d for d in range(1, B + 1) if B % d == 0]
    fits = [d for d in divisors if resident_bytes + d * per_img <= budget_bytes] or [1]
    best = max(fits)
    # v7x-only (2 TensorCores, 64 MiB VMEM): prefer a >=2-step grid, but only
    # when each half still fills >= 256 MXU rows.  On v5e/v6e (1 TC) splitting
    # just halves MXU row fill and doubles per-step overhead.
    if vmem_cap_bytes is not None and vmem_cap_bytes <= 64 * 1024 * 1024:
        multi = [d for d in fits if B // d >= 2 and d * OH >= 256]
        if multi:
            best = max(multi)
    return best


# ----------------------------------------------------------------------------
# Wrapper
# ----------------------------------------------------------------------------
def _build_toeplitz_weights(weight_ocikk, W, OW, stride, padding, dtype):
    """T[c, kh][w, ow*OC + oc] = weight[oc, c, kh, w + padding - ow*stride]
    when that kw index is valid, else 0.  Shape: (Cin, KH, W, OW*OC).
    The W-direction zero padding of ZeroPad2d is absorbed here."""
    OC, Cin, KH, KW = weight_ocikk.shape
    w_t = jnp.transpose(weight_ocikk, (1, 2, 3, 0))            # (Cin, KH, KW, OC)
    w_idx = jnp.arange(W)[:, None]                             # (W, 1)
    ow_idx = jnp.arange(OW)[None, :]                           # (1, OW)
    kw_idx = w_idx + padding - ow_idx * stride                 # (W, OW)
    valid = (kw_idx >= 0) & (kw_idx < KW)
    g = jnp.take(w_t, jnp.clip(kw_idx, 0, KW - 1), axis=2)     # (Cin, KH, W, OW, OC)
    g = g * valid[None, None, :, :, None].astype(w_t.dtype)
    return g.reshape(Cin, KH, W, OW * OC).astype(dtype)


def conv2d_block_forward(x_nchw, weight_ocikk, bias_oc, *, stride=1, padding=0,
                         compute_dtype=jnp.float32, batch_block=None):
    """Forward pass of Conv2dBlock (zero pad -> conv2d + bias -> ReLU).

    x_nchw:       (B, Cin, H, W)    float32 (consumed in native layout, no copy)
    weight_ocikk: (OC, Cin, KH, KW) float32 (PyTorch conv weight layout)
    bias_oc:      (OC,)             float32
    returns:      (B, OC, OH, OW)   float32 (PyTorch NCHW output layout)
    """
    B, Cin, H, W = x_nchw.shape
    OC, _, KH, KW = weight_ocikk.shape
    Hp, Wp = H + 2 * padding, W + 2 * padding
    OH = (Hp - KH) // stride + 1
    OW = (Wp - KW) // stride + 1
    OWOC = OW * OC

    # Tiny, weight-only preprocessing (could be cached outside the step fn).
    w_toep = _build_toeplitz_weights(weight_ocikk, W, OW, stride, padding,
                                     compute_dtype)
    b_row = jnp.tile(bias_oc.astype(jnp.float32), OW).reshape(1, OWOC)

    # ---- VMEM budget / batch block (generation-aware) ----
    x_bytes = x_nchw.dtype.itemsize
    cdt = jnp.dtype(compute_dtype).itemsize
    per_img_in = Cin * H * W * x_bytes
    per_img_out = OH * OWOC * 4
    per_img_scratch = Cin * Hp * W * cdt
    resident = Cin * KH * W * OWOC * cdt + OWOC * 4      # weights + bias

    vmem_cap = _tpu_vmem_capacity()
    budget = _vmem_budget_bytes(vmem_cap)

    if batch_block is None:
        Bt = _pick_batch_block(B, OH, per_img_in, per_img_out, per_img_scratch,
                               resident, budget, vmem_cap)
    else:
        # Clamp a caller-supplied block to the largest divisor of B (no assert).
        Bt = max(d for d in range(1, min(int(batch_block), B) + 1) if B % d == 0)
    grid = (B // Bt,)

    kernel = functools.partial(_conv2d_block_kernel, KH=KH, OH=OH, OW=OW, OC=OC,
                               stride=stride, padding=padding)

    flops = 2 * B * OH * OW * KH * KW * Cin * OC
    bytes_accessed = (B * per_img_in + Cin * KH * W * OWOC * cdt
                      + OWOC * 4 + B * per_img_out)
    tile_bytes = resident + Bt * (2 * per_img_in + 2 * per_img_out + per_img_scratch)
    vmem_limit = int(max(4 * 1024 * 1024, min(budget, 2 * tile_bytes)))

    # NOTE: weight/bias blocks have constant index maps; at ~100 KB their
    # double-buffering is negligible, so pipeline_mode=pl.Buffered(1) is omitted.
    out = pl.pallas_call(
        kernel,
        out_shape=jax.ShapeDtypeStruct((B, OH, OWOC), x_nchw.dtype),
        grid_spec=pltpu.PrefetchScalarGridSpec(
            num_scalar_prefetch=0,
            grid=grid,
            in_specs=[
                pl.BlockSpec((Bt, Cin, H, W), lambda b: (b, 0, 0, 0)),
                pl.BlockSpec((Cin, KH, W, OWOC), lambda b: (0, 0, 0, 0)),
                pl.BlockSpec((1, OWOC), lambda b: (0, 0)),
            ],
            out_specs=pl.BlockSpec((Bt, OH, OWOC), lambda b: (b, 0, 0)),
            scratch_shapes=[pltpu.VMEM((Bt, Cin, Hp, W), compute_dtype)],
        ),
        compiler_params=pltpu.CompilerParams(
            dimension_semantics=("parallel",),
            vmem_limit_bytes=vmem_limit),
        cost_estimate=pl.CostEstimate(flops=flops, transcendentals=0,
                                      bytes_accessed=bytes_accessed),
    )(x_nchw, w_toep, b_row)

    # Lane-dense NHWC-ish kernel output -> PyTorch NCHW (single tiny XLA op).
    return jnp.transpose(out.reshape(B, OH, OW, OC), (0, 3, 1, 2))


# ----------------------------------------------------------------------------
# Reference + test
# ----------------------------------------------------------------------------
def _reference_forward(x_nchw, weight_ocikk, bias_oc, *, stride=1, padding=0):
    """Pure-JAX reference (lax conv, f32) for correctness checking."""
    y = jax.lax.conv_general_dilated(
        x_nchw, weight_ocikk,
        window_strides=(stride, stride),
        padding=((padding, padding), (padding, padding)),
        dimension_numbers=("NCHW", "OIHW", "NCHW"))
    y = y + bias_oc.reshape(1, -1, 1, 1)
    return jnp.maximum(y, 0.0)


if __name__ == "__main__":
    # Module config: Conv2dBlock(input_dim=4, output_dim=8, kernel_size=3,
    #                            stride=1, padding=1, norm='none',
    #                            activation='relu', pad_type='zero')
    B, Cin, H, W = 2, 4, 16, 16
    OC, KH, KW = 8, 3, 3
    stride, padding = 1, 1

    key = jax.random.PRNGKey(0)
    kx, kwt, kb = jax.random.split(key, 3)
    x = jax.random.normal(kx, (B, Cin, H, W), dtype=jnp.float32)
    # Deterministic synthetic parameters (shapes match nn.Conv2d(4, 8, 3)).
    fan_in = Cin * KH * KW
    weight = jax.random.uniform(kwt, (OC, Cin, KH, KW), dtype=jnp.float32,
                                minval=-1.0, maxval=1.0) / np.sqrt(fan_in)
    bias = jax.random.uniform(kb, (OC,), dtype=jnp.float32,
                              minval=-1.0, maxval=1.0) / np.sqrt(fan_in)

    fwd = jax.jit(functools.partial(conv2d_block_forward,
                                    stride=stride, padding=padding))
    out = jax.block_until_ready(fwd(x, weight, bias))

    ref = jax.block_until_ready(
        _reference_forward(x, weight, bias, stride=stride, padding=padding))
    # compute_dtype defaults to f32; tolerance still covers MXU bf16-pass modes.
    np.testing.assert_allclose(np.asarray(out), np.asarray(ref),
                               rtol=2e-2, atol=2e-2)

    print("KERNEL_OK")
</pallas_src>

<mosaic_0001>
module attributes {stable_mosaic.version = 11 : i64} {
  func.func @_conv2d_block_kernel(%arg0: i32, %arg1: memref<2x4x16x16xf32, #tpu.memory_space<vmem>>, %arg2: memref<4x3x16x128xf32, #tpu.memory_space<vmem>>, %arg3: memref<1x128xf32, #tpu.memory_space<vmem>>, %arg4: memref<2x16x128xf32, #tpu.memory_space<vmem>>, %arg5: memref<2x4x18x16xf32, #tpu.memory_space<vmem>>) attributes {dimension_semantics = [#tpu.dimension_semantics<parallel>], iteration_bounds = array<i64: 1>, scalar_prefetch = 0 : i64, scratch_operands = 1 : i64, tpu.core_type = #tpu.core_type<tc>, window_params = [{transform_indices = @transform_0, window_bounds = array<i64: 2, 4, 16, 16>}, {pipeline_mode = #tpu.pipeline_mode<synchronous>, transform_indices = @transform_1, window_bounds = array<i64: 4, 3, 16, 128>}, {pipeline_mode = #tpu.pipeline_mode<synchronous>, transform_indices = @transform_2, window_bounds = array<i64: 1, 128>}, {transform_indices = @transform_3, window_bounds = array<i64: 2, 16, 128>}]} {
    %cst = arith.constant 0.000000e+00 : f32
    %0 = vector.broadcast %cst : f32 to vector<2x4x1x16xf32>
    %c0 = arith.constant 0 : index
    %c0_0 = arith.constant 0 : index
    %c0_1 = arith.constant 0 : index
    %c0_2 = arith.constant 0 : index
    %1 = vector.load %arg5[%c0, %c0_0, %c0_1, %c0_2] : memref<2x4x18x16xf32, #tpu.memory_space<vmem>>, vector<2x4x1x16xf32>
    tpu.vector_store %arg5[%c0, %c0_0, %c0_1, %c0_2], %0 {strides = array<i32>} : memref<2x4x18x16xf32, #tpu.memory_space<vmem>>, vector<2x4x1x16xf32>,
    %c0_3 = arith.constant 0 : index
    %c0_4 = arith.constant 0 : index
    %c17 = arith.constant 17 : index
    %c0_5 = arith.constant 0 : index
    %2 = vector.load %arg5[%c0_3, %c0_4, %c17, %c0_5] : memref<2x4x18x16xf32, #tpu.memory_space<vmem>>, vector<2x4x1x16xf32>
    tpu.vector_store %arg5[%c0_3, %c0_4, %c17, %c0_5], %0 {strides = array<i32>} : memref<2x4x18x16xf32, #tpu.memory_space<vmem>>, vector<2x4x1x16xf32>,
    %c0_6 = arith.constant 0 : index
    %c0_7 = arith.constant 0 : index
    %c0_8 = arith.constant 0 : index
    %c0_9 = arith.constant 0 : index
    %3 = vector.load %arg1[%c0_6, %c0_7, %c0_8, %c0_9] : memref<2x4x16x16xf32, #tpu.memory_space<vmem>>, vector<2x4x16x16xf32>
    %c0_10 = arith.constant 0 : index
    %c0_11 = arith.constant 0 : index
    %c1 = arith.constant 1 : index
    %c0_12 = arith.constant 0 : index
    %4 = vector.load %arg5[%c0_10, %c0_11, %c1, %c0_12] : memref<2x4x18x16xf32, #tpu.memory_space<vmem>>, vector<2x4x16x16xf32>
    tpu.vector_store %arg5[%c0_10, %c0_11, %c1, %c0_12], %3 {strides = array<i32>} : memref<2x4x18x16xf32, #tpu.memory_space<vmem>>, vector<2x4x16x16xf32>,
    %c0_13 = arith.constant 0 : index
    %c0_14 = arith.constant 0 : index
    %c0_15 = arith.constant 0 : index
    %c0_16 = arith.constant 0 : index
    %5 = vector.load %arg5[%c0_13, %c0_14, %c0_15, %c0_16] : memref<2x4x18x16xf32, #tpu.memory_space<vmem>>, vector<2x1x16x16xf32>
    %6 = vector.shape_cast %5 : vector<2x1x16x16xf32> to vector<2x16x16xf32>
    %7 = vector.shape_cast %6 : vector<2x16x16xf32> to vector<32x16xf32>
    %c0_17 = arith.constant 0 : index
    %c0_18 = arith.constant 0 : index
    %c0_19 = arith.constant 0 : index
    %c0_20 = arith.constant 0 : index
    %8 = vector.load %arg2[%c0_17, %c0_18, %c0_19, %c0_20] : memref<4x3x16x128xf32, #tpu.memory_space<vmem>>, vector<1x1x16x128xf32>
    %9 = vector.shape_cast %8 : vector<1x1x16x128xf32> to vector<16x128xf32>
    %cst_21 = arith.constant dense<0.000000e+00> : vector<32x128xf32>
    %10 = tpu.matmul %7, %9, %cst_21 {dimension_numbers = #tpu.dot_dimension_numbers<[1], [0], [0], [1], [0, 0, 1, 1], [], []>} : vector<32x16xf32>, vector<16x128xf32>, vector<32x128xf32> -> vector<32x128xf32>
    %c0_22 = arith.constant 0 : index
    %c0_23 = arith.constant 0 : index
    %c1_24 = arith.constant 1 : index
    %c0_25 = arith.constant 0 : index
    %11 = vector.load %arg5[%c0_22, %c0_23, %c1_24, %c0_25] : memref<2x4x18x16xf32, #tpu.memory_space<vmem>>, vector<2x1x16x16xf32>
    %12 = vector.shape_cast %11 : vector<2x1x16x16xf32> to vector<2x16x16xf32>
    %13 = vector.shape_cast %12 : vector<2x16x16xf32> to vector<32x16xf32>
    %c0_26 = arith.constant 0 : index
    %c1_27 = arith.constant 1 : index
    %c0_28 = arith.constant 0 : index
    %c0_29 = arith.constant 0 : index
    %14 = vector.load %arg2[%c0_26, %c1_27, %c0_28, %c0_29] : memref<4x3x16x128xf32, #tpu.memory_space<vmem>>, vector<1x1x16x128xf32>
    %15 = vector.shape_cast %14 : vector<1x1x16x128xf32> to vector<16x128xf32>
    %cst_30 = arith.constant dense<0.000000e+00> : vector<32x128xf32>
    %16 = tpu.matmul %13, %15, %cst_30 {dimension_numbers = #tpu.dot_dimension_numbers<[1], [0], [0], [1], [0, 0, 1, 1], [], []>} : vector<32x16xf32>, vector<16x128xf32>, vector<32x128xf32> -> vector<32x128xf32>
    %17 = arith.addf %10, %16 : vector<32x128xf32>
    %c0_31 = arith.constant 0 : index
    %c0_32 = arith.constant 0 : index
    %c2 = arith.constant 2 : index
    %c0_33 = arith.constant 0 : index
    %18 = vector.load %arg5[%c0_31, %c0_32, %c2, %c0_33] : memref<2x4x18x16xf32, #tpu.memory_space<vmem>>, vector<2x1x16x16xf32>
    %19 = vector.shape_cast %18 : vector<2x1x16x16xf32> to vector<2x16x16xf32>
    %20 = vector.shape_cast %19 : vector<2x16x16xf32> to vector<32x16xf32>
    %c0_34 = arith.constant 0 : index
    %c2_35 = arith.constant 2 : index
    %c0_36 = arith.constant 0 : index
    %c0_37 = arith.constant 0 : index
    %21 = vector.load %arg2[%c0_34, %c2_35, %c0_36, %c0_37] : memref<4x3x16x128xf32, #tpu.memory_space<vmem>>, vector<1x1x16x128xf32>
    %22 = vector.shape_cast %21 : vector<1x1x16x128xf32> to vector<16x128xf32>
    %cst_38 = arith.constant dense<0.000000e+00> : vector<32x128xf32>
    %23 = tpu.matmul %20, %22, %cst_38 {dimension_numbers = #tpu.dot_dimension_numbers<[1], [0], [0], [1], [0, 0, 1, 1], [], []>} : vector<32x16xf32>, vector<16x128xf32>, vector<32x128xf32> -> vector<32x128xf32>
    %24 = arith.addf %17, %23 : vector<32x128xf32>
    %c0_39 = arith.constant 0 : index
    %c1_40 = arith.constant 1 : index
    %c0_41 = arith.constant 0 : index
    %c0_42 = arith.constant 0 : index
    %25 = vector.load %arg5[%c0_39, %c1_40, %c0_41, %c0_42] : memref<2x4x18x16xf32, #tpu.memory_space<vmem>>, vector<2x1x16x16xf32>
    %26 = vector.shape_cast %25 : vector<2x1x16x16xf32> to vector<2x16x16xf32>
    %27 = vector.shape_cast %26 : vector<2x16x16xf32> to vector<32x16xf32>
    %c1_43 = arith.constant 1 : index
    %c0_44 = arith.constant 0 : index
    %c0_45 = arith.constant 0 : index
    %c0_46 = arith.constant 0 : index
    %28 = vector.load %arg2[%c1_43, %c0_44, %c0_45, %c0_46] : memref<4x3x16x128xf32, #tpu.memory_space<vmem>>, vector<1x1x16x128xf32>
    %29 = vector.shape_cast %28 : vector<1x1x16x128xf32> to vector<16x128xf32>
    %cst_47 = arith.constant dense<0.000000e+00> : vector<32x128xf32>
    %30 = tpu.matmul %27, %29, %cst_47 {dimension_numbers = #tpu.dot_dimension_numbers<[1], [0], [0], [1], [0, 0, 1, 1], [], []>} : vector<32x16xf32>, vector<16x128xf32>, vector<32x128xf32> -> vector<32x128xf32>
    %31 = arith.addf %24, %30 : vector<32x128xf32>
    %c0_48 = arith.constant 0 : index
    %c1_49 = arith.constant 1 : index
    %c1_50 = arith.constant 1 : index
    %c0_51 = arith.constant 0 : index
    %32 = vector.load %arg5[%c0_48, %c1_49, %c1_50, %c0_51] : memref<2x4x18x16xf32, #tpu.memory_space<vmem>>, vector<2x1x16x16xf32>
    %33 = vector.shape_cast %32 : vector<2x1x16x16xf32> to vector<2x16x16xf32>
    %34 = vector.shape_cast %33 : vector<2x16x16xf32> to vector<32x16xf32>
    %c1_52 = arith.constant 1 : index
    %c1_53 = arith.constant 1 : index
    %c0_54 = arith.constant 0 : index
    %c0_55 = arith.constant 0 : index
    %35 = vector.load %arg2[%c1_52, %c1_53, %c0_54, %c0_55] : memref<4x3x16x128xf32, #tpu.memory_space<vmem>>, vector<1x1x16x128xf32>
    %36 = vector.shape_cast %35 : vector<1x1x16x128xf32> to vector<16x128xf32>
    %cst_56 = arith.constant dense<0.000000e+00> : vector<32x128xf32>
    %37 = tpu.matmul %34, %36, %cst_56 {dimension_numbers = #tpu.dot_dimension_numbers<[1], [0], [0], [1], [0, 0, 1, 1], [], []>} : vector<32x16xf32>, vector<16x128xf32>, vector<32x128xf32> -> vector<32x128xf32>
    %38 = arith.addf %31, %37 : vector<32x128xf32>
    %c0_57 = arith.constant 0 : index
    %c1_58 = arith.constant 1 : index
    %c2_59 = arith.constant 2 : index
    %c0_60 = arith.constant 0 : index
    %39 = vector.load %arg5[%c0_57, %c1_58, %c2_59, %c0_60] : memref<2x4x18x16xf32, #tpu.memory_space<vmem>>, vector<2x1x16x16xf32>
    %40 = vector.shape_cast %39 : vector<2x1x16x16xf32> to vector<2x16x16xf32>
    %41 = vector.shape_cast %40 : vector<2x16x16xf32> to vector<32x16xf32>
    %c1_61 = arith.constant 1 : index
    %c2_62 = arith.constant 2 : index
    %c0_63 = arith.constant 0 : index
    %c0_64 = arith.constant 0 : index
    %42 = vector.load %arg2[%c1_61, %c2_62, %c0_63, %c0_64] : memref<4x3x16x128xf32, #tpu.memory_space<vmem>>, vector<1x1x16x128xf32>
    %43 = vector.shape_cast %42 : vector<1x1x16x128xf32> to vector<16x128xf32>
    %cst_65 = arith.constant dense<0.000000e+00> : vector<32x128xf32>
    %44 = tpu.matmul %41, %43, %cst_65 {dimension_numbers = #tpu.dot_dimension_numbers<[1], [0], [0], [1], [0, 0, 1, 1], [], []>} : vector<32x16xf32>, vector<16x128xf32>, vector<32x128xf32> -> vector<32x128xf32>
    %45 = arith.addf %38, %44 : vector<32x128xf32>
    %c0_66 = arith.constant 0 : index
    %c2_67 = arith.constant 2 : index
    %c0_68 = arith.constant 0 : index
    %c0_69 = arith.constant 0 : index
    %46 = vector.load %arg5[%c0_66, %c2_67, %c0_68, %c0_69] : memref<2x4x18x16xf32, #tpu.memory_space<vmem>>, vector<2x1x16x16xf32>
    %47 = vector.shape_cast %46 : vector<2x1x16x16xf32> to vector<2x16x16xf32>
    %48 = vector.shape_cast %47 : vector<2x16x16xf32> to vector<32x16xf32>
    %c2_70 = arith.constant 2 : index
    %c0_71 = arith.constant 0 : index
    %c0_72 = arith.constant 0 : index
    %c0_73 = arith.constant 0 : index
    %49 = vector.load %arg2[%c2_70, %c0_71, %c0_72, %c0_73] : memref<4x3x16x128xf32, #tpu.memory_space<vmem>>, vector<1x1x16x128xf32>
    %50 = vector.shape_cast %49 : vector<1x1x16x128xf32> to vector<16x128xf32>
    %cst_74 = arith.constant dense<0.000000e+00> : vector<32x128xf32>
    %51 = tpu.matmul %48, %50, %cst_74 {dimension_numbers = #tpu.dot_dimension_numbers<[1], [0], [0], [1], [0, 0, 1, 1], [], []>} : vector<32x16xf32>, vector<16x128xf32>, vector<32x128xf32> -> vector<32x128xf32>
    %52 = arith.addf %45, %51 : vector<32x128xf32>
    %c0_75 = arith.constant 0 : index
    %c2_76 = arith.constant 2 : index
    %c1_77 = arith.constant 1 : index
    %c0_78 = arith.constant 0 : index
    %53 = vector.load %arg5[%c0_75, %c2_76, %c1_77, %c0_78] : memref<2x4x18x16xf32, #tpu.memory_space<vmem>>, vector<2x1x16x16xf32>
    %54 = vector.shape_cast %53 : vector<2x1x16x16xf32> to vector<2x16x16xf32>
    %55 = vector.shape_cast %54 : vector<2x16x16xf32> to vector<32x16xf32>
    %c2_79 = arith.constant 2 : index
    %c1_80 = arith.constant 1 : index
    %c0_81 = arith.constant 0 : index
    %c0_82 = arith.constant 0 : index
    %56 = vector.load %arg2[%c2_79, %c1_80, %c0_81, %c0_82] : memref<4x3x16x128xf32, #tpu.memory_space<vmem>>, vector<1x1x16x128xf32>
    %57 = vector.shape_cast %56 : vector<1x1x16x128xf32> to vector<16x128xf32>
    %cst_83 = arith.constant dense<0.000000e+00> : vector<32x128xf32>
    %58 = tpu.matmul %55, %57, %cst_83 {dimension_numbers = #tpu.dot_dimension_numbers<[1], [0], [0], [1], [0, 0, 1, 1], [], []>} : vector<32x16xf32>, vector<16x128xf32>, vector<32x128xf32> -> vector<32x128xf32>
    %59 = arith.addf %52, %58 : vector<32x128xf32>
    %c0_84 = arith.constant 0 : index
    %c2_85 = arith.constant 2 : index
    %c2_86 = arith.constant 2 : index
    %c0_87 = arith.constant 0 : index
    %60 = vector.load %arg5[%c0_84, %c2_85, %c2_86, %c0_87] : memref<2x4x18x16xf32, #tpu.memory_space<vmem>>, vector<2x1x16x16xf32>
    %61 = vector.shape_cast %60 : vector<2x1x16x16xf32> to vector<2x16x16xf32>
    %62 = vector.shape_cast %61 : vector<2x16x16xf32> to vector<32x16xf32>
    %c2_88 = arith.constant 2 : index
    %c2_89 = arith.constant 2 : index
    %c0_90 = arith.constant 0 : index
    %c0_91 = arith.constant 0 : index
    %63 = vector.load %arg2[%c2_88, %c2_89, %c0_90, %c0_91] : memref<4x3x16x128xf32, #tpu.memory_space<vmem>>, vector<1x1x16x128xf32>
    %64 = vector.shape_cast %63 : vector<1x1x16x128xf32> to vector<16x128xf32>
    %cst_92 = arith.constant dense<0.000000e+00> : vector<32x128xf32>
    %65 = tpu.matmul %62, %64, %cst_92 {dimension_numbers = #tpu.dot_dimension_numbers<[1], [0], [0], [1], [0, 0, 1, 1], [], []>} : vector<32x16xf32>, vector<16x128xf32>, vector<32x128xf32> -> vector<32x128xf32>
    %66 = arith.addf %59, %65 : vector<32x128xf32>
    %c0_93 = arith.constant 0 : index
    %c3 = arith.constant 3 : index
    %c0_94 = arith.constant 0 : index
    %c0_95 = arith.constant 0 : index
    %67 = vector.load %arg5[%c0_93, %c3, %c0_94, %c0_95] : memref<2x4x18x16xf32, #tpu.memory_space<vmem>>, vector<2x1x16x16xf32>
    %68 = vector.shape_cast %67 : vector<2x1x16x16xf32> to vector<2x16x16xf32>
    %69 = vector.shape_cast %68 : vector<2x16x16xf32> to vector<32x16xf32>
    %c3_96 = arith.constant 3 : index
    %c0_97 = arith.constant 0 : index
    %c0_98 = arith.constant 0 : index
    %c0_99 = arith.constant 0 : index
    %70 = vector.load %arg2[%c3_96, %c0_97, %c0_98, %c0_99] : memref<4x3x16x128xf32, #tpu.memory_space<vmem>>, vector<1x1x16x128xf32>
    %71 = vector.shape_cast %70 : vector<1x1x16x128xf32> to vector<16x128xf32>
    %cst_100 = arith.constant dense<0.000000e+00> : vector<32x128xf32>
    %72 = tpu.matmul %69, %71, %cst_100 {dimension_numbers = #tpu.dot_dimension_numbers<[1], [0], [0], [1], [0, 0, 1, 1], [], []>} : vector<32x16xf32>, vector<16x128xf32>, vector<32x128xf32> -> vector<32x128xf32>
    %73 = arith.addf %66, %72 : vector<32x128xf32>
    %c0_101 = arith.constant 0 : index
    %c3_102 = arith.constant 3 : index
    %c1_103 = arith.constant 1 : index
    %c0_104 = arith.constant 0 : index
    %74 = vector.load %arg5[%c0_101, %c3_102, %c1_103, %c0_104] : memref<2x4x18x16xf32, #tpu.memory_space<vmem>>, vector<2x1x16x16xf32>
    %75 = vector.shape_cast %74 : vector<2x1x16x16xf32> to vector<2x16x16xf32>
    %76 = vector.shape_cast %75 : vector<2x16x16xf32> to vector<32x16xf32>
    %c3_105 = arith.constant 3 : index
    %c1_106 = arith.constant 1 : index
    %c0_107 = arith.constant 0 : index
    %c0_108 = arith.constant 0 : index
    %77 = vector.load %arg2[%c3_105, %c1_106, %c0_107, %c0_108] : memref<4x3x16x128xf32, #tpu.memory_space<vmem>>, vector<1x1x16x128xf32>
    %78 = vector.shape_cast %77 : vector<1x1x16x128xf32> to vector<16x128xf32>
    %cst_109 = arith.constant dense<0.000000e+00> : vector<32x128xf32>
    %79 = tpu.matmul %76, %78, %cst_109 {dimension_numbers = #tpu.dot_dimension_numbers<[1], [0], [0], [1], [0, 0, 1, 1], [], []>} : vector<32x16xf32>, vector<16x128xf32>, vector<32x128xf32> -> vector<32x128xf32>
    %80 = arith.addf %73, %79 : vector<32x128xf32>
    %c0_110 = arith.constant 0 : index
    %c3_111 = arith.constant 3 : index
    %c2_112 = arith.constant 2 : index
    %c0_113 = arith.constant 0 : index
    %81 = vector.load %arg5[%c0_110, %c3_111, %c2_112, %c0_113] : memref<2x4x18x16xf32, #tpu.memory_space<vmem>>, vector<2x1x16x16xf32>
    %82 = vector.shape_cast %81 : vector<2x1x16x16xf32> to vector<2x16x16xf32>
    %83 = vector.shape_cast %82 : vector<2x16x16xf32> to vector<32x16xf32>
    %c3_114 = arith.constant 3 : index
    %c2_115 = arith.constant 2 : index
    %c0_116 = arith.constant 0 : index
    %c0_117 = arith.constant 0 : index
    %84 = vector.load %arg2[%c3_114, %c2_115, %c0_116, %c0_117] : memref<4x3x16x128xf32, #tpu.memory_space<vmem>>, vector<1x1x16x128xf32>
    %85 = vector.shape_cast %84 : vector<1x1x16x128xf32> to vector<16x128xf32>
    %cst_118 = arith.constant dense<0.000000e+00> : vector<32x128xf32>
    %86 = tpu.matmul %83, %85, %cst_118 {dimension_numbers = #tpu.dot_dimension_numbers<[1], [0], [0], [1], [0, 0, 1, 1], [], []>} : vector<32x16xf32>, vector<16x128xf32>, vector<32x128xf32> -> vector<32x128xf32>
    %87 = arith.addf %80, %86 : vector<32x128xf32>
    %c0_119 = arith.constant 0 : index
    %c0_120 = arith.constant 0 : index
    %88 = vector.load %arg3[%c0_119, %c0_120] : memref<1x128xf32, #tpu.memory_space<vmem>>, vector<1x128xf32>
    %89 = vector.broadcast %88 : vector<1x128xf32> to vector<32x128xf32>
    %90 = arith.addf %87, %89 : vector<32x128xf32>
    %cst_121 = arith.constant 0.000000e+00 : f32
    %91 = vector.broadcast %cst_121 : f32 to vector<32x128xf32>
    %92 = arith.maximumf %90, %91 : vector<32x128xf32>
    %93 = vector.shape_cast %92 : vector<32x128xf32> to vector<2x16x128xf32>
    %c0_122 = arith.constant 0 : index
    %c0_123 = arith.constant 0 : index
    %c0_124 = arith.constant 0 : index
    %94 = vector.load %arg4[%c0_122, %c0_123, %c0_124] : memref<2x16x128xf32, #tpu.memory_space<vmem>>, vector<2x16x128xf32>
    tpu.vector_store %arg4[%c0_122, %c0_123, %c0_124], %93 {strides = array<i32>} : memref<2x16x128xf32, #tpu.memory_space<vmem>>, vector<2x16x128xf32>,
    return
  }
  func.func @transform_0(%arg0: i32) -> (i32, i32, i32, i32) {
    %c0_i32 = arith.constant 0 : i32
    %c0_i32_0 = arith.constant 0 : i32
    %c0_i32_1 = arith.constant 0 : i32
    %c0_i32_2 = arith.constant 0 : i32
    return %arg0, %c0_i32, %c0_i32_0, %c0_i32_1 : i32, i32, i32, i32
  }
  func.func @transform_1(%arg0: i32) -> (i32, i32, i32, i32) {
    %c0_i32 = arith.constant 0 : i32
    %c0_i32_0 = arith.constant 0 : i32
    %c0_i32_1 = arith.constant 0 : i32
    %c0_i32_2 = arith.constant 0 : i32
    %c0_i32_3 = arith.constant 0 : i32
    return %c0_i32, %c0_i32_0, %c0_i32_1, %c0_i32_2 : i32, i32, i32, i32
  }
  func.func @transform_2(%arg0: i32) -> (i32, i32) {
    %c0_i32 = arith.constant 0 : i32
    %c0_i32_0 = arith.constant 0 : i32
    %c0_i32_1 = arith.constant 0 : i32
    return %c0_i32, %c0_i32_0 : i32, i32
  }
  func.func @transform_3(%arg0: i32) -> (i32, i32, i32) {
    %c0_i32 = arith.constant 0 : i32
    %c0_i32_0 = arith.constant 0 : i32
    %c0_i32_1 = arith.constant 0 : i32
    return %arg0, %c0_i32, %c0_i32_0 : i32, i32, i32
  }
}

</mosaic_0001>

<llo_original>
// kernel: tile.8
$region0: #{tile.8}
  #allocation0 [shape = 's32[1]{0}', space=sflag, size = 0x4, scoped, tag = 'scoped memory for tile.8']
  %s0 = inlined_call_operand.vmem [shape: f32[8], index: 0, kind: input, shape index: {}]
  %s1 = inlined_call_operand.vmem [shape: f32[16,8], index: 1, kind: output, shape index: {}]
  // Predicated region
  $region2: #{tile.8} parent=0 // pred_check
    _
  $region3: #{tile.8} parent=0 // pred_check_branch
    %3 = sbr.rel (0) target = $region5
  $region4: #{tile.8} parent=0 // pred_region
    _
  $region5: #{tile.8} parent=0 // pred_fallthru
    _
  %v4 = vld [vmem:[%s0] ss:$0 sm:$0xff]
  %5 = vst [vmem:[%s1] sm:$0xff] %v4
  %s6 = scalar_lea.vmem %s1, 8
  %7 = vst [vmem:[%s6] sm:$0xff] %v4

// kernel: tile.9
$region0: #{tile.9}
  %s0 = inlined_call_operand.vmem [shape: f32[16,8], index: 0, kind: input, shape index: {}]
  %s1 = inlined_call_operand.vmem [shape: f32[1,128], index: 1, kind: output, shape index: {}]
  $region1: #{tile.9} parent=0
    #allocation0 [shape = 'u8[4096]{0}', space=vmem, size = 0x1000, scoped, tag = 'scoped mem for output reshape']
    %v2 = vld [vmem:[%s0] sm:$0x1]
    %vm3 = vcmask 64512
    %4 = vst.msk [vmem:[#allocation0] sm:$0x1] %vm3, %v2
    %s5 = scalar_lea.vmem %s0, 15
    %v6 = vld [vmem:[%s5] sm:$0x1]
    %7 = vrot.lane.b32.xlu0 %v6, 120
    %v8 = vpop.permute.xlu0 %7
    %vm9 = vcmask 1048512
    %10 = vst.msk [vmem:[#allocation0] sm:$0x1] %vm9, %v8
    %s11 = scalar_lea.vmem %s0, 14
    %v12 = vld [vmem:[%s11] sm:$0x1]
    %13 = vrot.lane.b32.xlu0 %v12, 112
    %v14 = vpop.permute.xlu0 %13
    %vm15 = vcmask 982912
    %16 = vst.msk [vmem:[#allocation0] sm:$0x1] %vm15, %v14
    %s17 = scalar_lea.vmem %s0, 13
    %v18 = vld [vmem:[%s17] sm:$0x1]
    %19 = vrot.lane.b32.xlu0 %v18, 104
    %v20 = vpop.permute.xlu0 %19
    %vm21 = vcmask 917312
    %22 = vst.msk [vmem:[#allocation0] sm:$0x1] %vm21, %v20
    %s23 = scalar_lea.vmem %s0, 12
    %v24 = vld [vmem:[%s23] sm:$0x1]
    %25 = vrot.lane.b32.xlu0 %v24, 96
    %v26 = vpop.permute.xlu0 %25
    %vm27 = vcmask 851712
    %28 = vst.msk [vmem:[#allocation0] sm:$0x1] %vm27, %v26
    %s29 = scalar_lea.vmem %s0, 11
    %v30 = vld [vmem:[%s29] sm:$0x1]
    %31 = vrot.lane.b32.xlu0 %v30, 88
    %v32 = vpop.permute.xlu0 %31
    %vm33 = vcmask 786112
    %34 = vst.msk [vmem:[#allocation0] sm:$0x1] %vm33, %v32
    %s35 = scalar_lea.vmem %s0, 10
    %v36 = vld [vmem:[%s35] sm:$0x1]
    %37 = vrot.lane.b32.xlu0 %v36, 80
    %v38 = vpop.permute.xlu0 %37
    %vm39 = vcmask 720512
    %40 = vst.msk [vmem:[#allocation0] sm:$0x1] %vm39, %v38
    %s41 = scalar_lea.vmem %s0, 9
    %v42 = vld [vmem:[%s41] sm:$0x1]
    %43 = vrot.lane.b32.xlu0 %v42, 72
    %v44 = vpop.permute.xlu0 %43
    %vm45 = vcmask 654912
    %46 = vst.msk [vmem:[#allocation0] sm:$0x1] %vm45, %v44
    %s47 = scalar_lea.vmem %s0, 8
    %v48 = vld [vmem:[%s47] sm:$0x1]
    %49 = vrot.lane.b32.xlu0 %v48, 64
    %v50 = vpop.permute.xlu0 %49
    %vm51 = vcmask 589312
    %52 = vst.msk [vmem:[#allocation0] sm:$0x1] %vm51, %v50
    %s53 = scalar_lea.vmem %s0, 7
    %v54 = vld [vmem:[%s53] sm:$0x1]
    %55 = vrot.lane.b32.xlu0 %v54, 56
    %v56 = vpop.permute.xlu0 %55
    %vm57 = vcmask 523712
    %58 = vst.msk [vmem:[#allocation0] sm:$0x1] %vm57, %v56
    %s59 = scalar_lea.vmem %s0, 6
    %v60 = vld [vmem:[%s59] sm:$0x1]
    %61 = vrot.lane.b32.xlu0 %v60, 48
    %v62 = vpop.permute.xlu0 %61
    %vm63 = vcmask 458112
    %64 = vst.msk [vmem:[#allocation0] sm:$0x1] %vm63, %v62
    %s65 = scalar_lea.vmem %s0, 5
    %v66 = vld [vmem:[%s65] sm:$0x1]
    %67 = vrot.lane.b32.xlu0 %v66, 40
    %v68 = vpop.permute.xlu0 %67
    %vm69 = vcmask 392512
    %70 = vst.msk [vmem:[#allocation0] sm:$0x1] %vm69, %v68
    %s71 = scalar_lea.vmem %s0, 4
    %v72 = vld [vmem:[%s71] sm:$0x1]
    %73 = vrot.lane.b32.xlu0 %v72, 32
    %v74 = vpop.permute.xlu0 %73
    %vm75 = vcmask 326912
    %76 = vst.msk [vmem:[#allocation0] sm:$0x1] %vm75, %v74
    %s77 = scalar_lea.vmem %s0, 3
    %v78 = vld [vmem:[%s77] sm:$0x1]
    %79 = vrot.lane.b32.xlu0 %v78, 24
    %v80 = vpop.permute.xlu0 %79
    %vm81 = vcmask 261312
    %82 = vst.msk [vmem:[#allocation0] sm:$0x1] %vm81, %v80
    %s83 = scalar_lea.vmem %s0, 2
    %v84 = vld [vmem:[%s83] sm:$0x1]
    %85 = vrot.lane.b32.xlu0 %v84, 16
    %v86 = vpop.permute.xlu0 %85
    %vm87 = vcmask 195712
    %88 = vst.msk [vmem:[#allocation0] sm:$0x1] %vm87, %v86
    %s89 = scalar_lea.vmem %s0, 1
    %v90 = vld [vmem:[%s89] sm:$0x1]
    %91 = vrot.lane.b32.xlu0 %v90, 8
    %v92 = vpop.permute.xlu0 %91
    %vm93 = vcmask 130112
    %94 = vst.msk [vmem:[#allocation0] sm:$0x1] %vm93, %v92
    %s96 = ssub.s32 2, 1
    %v97 = vld [vmem:[#allocation0] sm:%s96]
    %s99 = ssub.s32 2, 1
    %100 = vst [vmem:[%s1] sm:%s99] %v97

// kernel: conv2d_block_forward.1
$region0: #{conv2d_block_forward.1}
  #allocation0 [shape = 'u32[]', space=smem, size = 0x4, offset = 0x4, fixed_abs, tag = 'smem constant byte address 0x4 - core index']
  #allocation1 [shape = 'u32[72,128]{1,0:T(1,128)}', space=vmem, size = 0x9000, scoped, tag = 'internal scratch']
  #allocation2 [shape = 'f32[2,4,18,16]{3,2,1,0:T(8,128)}', space=vmem, size = 0x18000, scoped, tag = 'scratch operand']
  %s0 = inlined_call_operand.vmem [shape: f32[2,4,16,16], index: 0, kind: input, shape index: {}]
  %s1 = inlined_call_operand.vmem [shape: f32[4,3,16,128], index: 1, kind: input, shape index: {}]
  %s2 = inlined_call_operand.vmem [shape: f32[1,128], index: 2, kind: input, shape index: {}]
  %s3 = inlined_call_operand.vmem [shape: f32[2,16,128], index: 3, kind: output, shape index: {}]
  %s4 = sld [smem:[#allocation0]]
  $region22: #{conv2d_block_forward.1} parent=0
    _
  %s6 = ssub.s32 1, %s4
  %s7 = scalar_select 0, %s6, %s4
  // Predicated region
  $region2: #{conv2d_block_forward.1} parent=0 // pred_check
    _
  $region3: #{conv2d_block_forward.1} parent=0 // pred_check_branch
    %9 = sbr.rel (0) target = $region5
  $region4: #{conv2d_block_forward.1} parent=0 // pred_region
    _
  $region5: #{conv2d_block_forward.1} parent=0 // pred_fallthru
    _
  // Predicated region
  $region6: #{conv2d_block_forward.1} parent=0 // pred_check
    _
  $region7: #{conv2d_block_forward.1} parent=0 // pred_check_branch
    %11 = sbr.rel (0) target = $region9
  $region8: #{conv2d_block_forward.1} parent=0 // pred_region
    _
  $region9: #{conv2d_block_forward.1} parent=0 // pred_fallthru
    _
  // Predicated region
  $region10: #{conv2d_block_forward.1} parent=0 // pred_check
    _
  $region11: #{conv2d_block_forward.1} parent=0 // pred_check_branch
    %13 = sbr.rel (0) target = $region13
  $region12: #{conv2d_block_forward.1} parent=0 // pred_region
    _
  $region13: #{conv2d_block_forward.1} parent=0 // pred_fallthru
    _
  %vm14 = vcmask 122880
  %15 = vst.msk [vmem:[#allocation2] sm:$0x1] %vm14, 0.0
  %16 = vst.msk [vmem:[#allocation2 + $0x18] sm:$0x1] %vm14, 0.0
  %17 = vst.msk [vmem:[#allocation2 + $0x30] sm:$0x1] %vm14, 0.0
  %18 = vst.msk [vmem:[#allocation2 + $0x48] sm:$0x1] %vm14, 0.0
  %19 = vst.msk [vmem:[#allocation2 + $0x60] sm:$0x1] %vm14, 0.0
  %20 = vst.msk [vmem:[#allocation2 + $0x78] sm:$0x1] %vm14, 0.0
  %21 = vst.msk [vmem:[#allocation2 + $0x90] sm:$0x1] %vm14, 0.0
  %22 = vst.msk [vmem:[#allocation2 + $0xa8] sm:$0x1] %vm14, 0.0
  %23 = vst.msk [vmem:[#allocation2 + $0x11] sm:$0x1] %vm14, 0.0
  %24 = vst.msk [vmem:[#allocation2 + $0x29] sm:$0x1] %vm14, 0.0
  %25 = vst.msk [vmem:[#allocation2 + $0x41] sm:$0x1] %vm14, 0.0
  %26 = vst.msk [vmem:[#allocation2 + $0x59] sm:$0x1] %vm14, 0.0
  %27 = vst.msk [vmem:[#allocation2 + $0x71] sm:$0x1] %vm14, 0.0
  %28 = vst.msk [vmem:[#allocation2 + $0x89] sm:$0x1] %vm14, 0.0
  %29 = vst.msk [vmem:[#allocation2 + $0xa1] sm:$0x1] %vm14, 0.0
  %30 = vst.msk [vmem:[#allocation2 + $0xb9] sm:$0x1] %vm14, 0.0
  %v31 = vld [vmem:[%s0] sm:$0xff]
  %v32 = vld [vmem:[%s0 + $0x8] sm:$0xff]
  %v33 = vld [vmem:[%s0 + $0x10] sm:$0xff]
  %v34 = vld [vmem:[%s0 + $0x18] sm:$0xff]
  %v35 = vld [vmem:[%s0 + $0x20] sm:$0xff]
  %v36 = vld [vmem:[%s0 + $0x28] sm:$0xff]
  %v37 = vld [vmem:[%s0 + $0x30] sm:$0xff]
  %v38 = vld [vmem:[%s0 + $0x38] sm:$0xff]
  %v39 = vld [vmem:[%s0 + $0x40] sm:$0xff]
  %v40 = vld [vmem:[%s0 + $0x48] sm:$0xff]
  %v41 = vld [vmem:[%s0 + $0x50] sm:$0xff]
  %v42 = vld [vmem:[%s0 + $0x58] sm:$0xff]
  %v43 = vld [vmem:[%s0 + $0x60] sm:$0xff]
  %v44 = vld [vmem:[%s0 + $0x68] sm:$0xff]
  %v45 = vld [vmem:[%s0 + $0x70] sm:$0xff]
  %v46 = vld [vmem:[%s0 + $0x78] sm:$0xff]
  %vm47 = vcmask 130048
  %48 = vst.msk [vmem:[#allocation2 + $0x1] sm:$0xff] %vm47, %v31
  %49 = vst.msk [vmem:[#allocation2 + $0x9] sm:$0xff] %vm47, %v32
  %50 = vst.msk [vmem:[#allocation2 + $0x19] sm:$0xff] %vm47, %v33
  %51 = vst.msk [vmem:[#allocation2 + $0x21] sm:$0xff] %vm47, %v34
  %52 = vst.msk [vmem:[#allocation2 + $0x31] sm:$0xff] %vm47, %v35
  %53 = vst.msk [vmem:[#allocation2 + $0x39] sm:$0xff] %vm47, %v36
  %54 = vst.msk [vmem:[#allocation2 + $0x49] sm:$0xff] %vm47, %v37
  %55 = vst.msk [vmem:[#allocation2 + $0x51] sm:$0xff] %vm47, %v38
  %56 = vst.msk [vmem:[#allocation2 + $0x61] sm:$0xff] %vm47, %v39
  %57 = vst.msk [vmem:[#allocation2 + $0x69] sm:$0xff] %vm47, %v40
  %58 = vst.msk [vmem:[#allocation2 + $0x79] sm:$0xff] %vm47, %v41
  %59 = vst.msk [vmem:[#allocation2 + $0x81] sm:$0xff] %vm47, %v42
  %60 = vst.msk [vmem:[#allocation2 + $0x91] sm:$0xff] %vm47, %v43
  %61 = vst.msk [vmem:[#allocation2 + $0x99] sm:$0xff] %vm47, %v44
  %62 = vst.msk [vmem:[#allocation2 + $0xa9] sm:$0xff] %vm47, %v45
  %63 = vst.msk [vmem:[#allocation2 + $0xb1] sm:$0xff] %vm47, %v46
  %v64 = vld [vmem:[#allocation2] sm:$0xff]
  %v65 = vld [vmem:[#allocation2 + $0x8] sm:$0xff]
  %v66 = vld [vmem:[#allocation2 + $0x60] sm:$0xff]
  %v67 = vld [vmem:[#allocation2 + $0x68] sm:$0xff]
  %v68 = vld [vmem:[%s1] sm:$0xff]
  %v69 = vld [vmem:[%s1 + $0x8] sm:$0xff]
  %v70 = vld [vmem:[#allocation2 + $0x1] sm:$0xff]
  %v71 = vld [vmem:[#allocation2 + $0x9] sm:$0xff]
  %v72 = vld [vmem:[#allocation2 + $0x61] sm:$0xff]
  %v73 = vld [vmem:[#allocation2 + $0x69] sm:$0xff]
  %s74 = scalar_lea.vmem %s1, 16
  %v75 = vld [vmem:[%s74] sm:$0xff]
  %v76 = vld [vmem:[%s74 + $0x8] sm:$0xff]
  %v78 = vsel %vm47, %v70, 0
  %v81 = vsel %vm47, %v71, 0
  %v84 = vsel %vm47, %v72, 0
  %v87 = vsel %vm47, %v73, 0
  %89 = vmatpush.msra.mxu0 0.0
  %90 = vmatpush.msra.mxu0 0.0
  %91 = vmatpush.msra.mxu0 0.0
  %92 = vmatpush.msra.mxu0 0.0
  %93 = vmatpush.msra.mxu0 0.0
  %94 = vmatpush.msra.mxu0 0.0
  %95 = vmatpush.msra.mxu0 0.0
  %96 = vmatpush.msra.mxu0 0.0
  %97 = vmatpush.msra.mxu0 0.0
  %98 = vmatpush.msra.mxu0 0.0
  %99 = vmatpush.msra.mxu0 0.0
  %100 = vmatpush.msra.mxu0 0.0
  %101 = vmatpush.msra.mxu0 0.0
  %102 = vmatpush.msra.mxu0 0.0
  %103 = vmatpush.msra.mxu0 %v76
  %104 = vmatpush.msra.mxu0 %v75
  %105 = vmatmul.f32.gmra.mxu0 %v78
  %v106 = vpop.f32.mrf.mxu0
  %v107 = vadd.f32 0.0, %v106
  %108 = vmatmul.f32.gmra.mxu0 %v81
  %v109 = vpop.f32.mrf.mxu0
  %v110 = vadd.f32 0.0, %v109
  %111 = vmatmul.f32.gmra.mxu0 %v84
  %v112 = vpop.f32.mrf.mxu0
  %v113 = vadd.f32 0.0, %v112
  %114 = vmatmul.f32.gmra.mxu0 %v87
  %v115 = vpop.f32.mrf.mxu0
  %v116 = vadd.f32 0.0, %v115
  %117 = vdwg.mxu0
  %v119 = vsel %vm47, %v64, 0
  %v122 = vsel %vm47, %v65, 0
  %v125 = vsel %vm47, %v66, 0
  %v128 = vsel %vm47, %v67, 0
  %130 = vmatpush.msra.mxu0 0.0
  %131 = vmatpush.msra.mxu0 0.0
  %132 = vmatpush.msra.mxu0 0.0
  %133 = vmatpush.msra.mxu0 0.0
  %134 = vmatpush.msra.mxu0 0.0
  %135 = vmatpush.msra.mxu0 0.0
  %136 = vmatpush.msra.mxu0 0.0
  %137 = vmatpush.msra.mxu0 0.0
  %138 = vmatpush.msra.mxu0 0.0
  %139 = vmatpush.msra.mxu0 0.0
  %140 = vmatpush.msra.mxu0 0.0
  %141 = vmatpush.msra.mxu0 0.0
  %142 = vmatpush.msra.mxu0 0.0
  %143 = vmatpush.msra.mxu0 0.0
  %144 = vmatpush.msra.mxu0 %v69
  %145 = vmatpush.msra.mxu0 %v68
  %146 = vmatmul.f32.gmra.mxu0 %v119
  %v147 = vpop.f32.mrf.mxu0
  %v148 = vadd.f32 %v107, %v147
  %149 = vmatmul.f32.gmra.mxu0 %v122
  %v150 = vpop.f32.mrf.mxu0
  %v151 = vadd.f32 %v110, %v150
  %152 = vmatmul.f32.gmra.mxu0 %v125
  %v153 = vpop.f32.mrf.mxu0
  %v154 = vadd.f32 %v113, %v153
  %155 = vmatmul.f32.gmra.mxu0 %v128
  %v156 = vpop.f32.mrf.mxu0
  %v157 = vadd.f32 %v116, %v156
  %158 = vdwg.mxu0
  %v159 = vld [vmem:[#allocation2 + $0x2] sm:$0xff]
  %v160 = vld [vmem:[#allocation2 + $0xa] sm:$0xff]
  %v161 = vld [vmem:[#allocation2 + $0x62] sm:$0xff]
  %v162 = vld [vmem:[#allocation2 + $0x6a] sm:$0xff]
  %s163 = scalar_lea.vmem %s1, 32
  %v164 = vld [vmem:[%s163] sm:$0xff]
  %v165 = vld [vmem:[%s163 + $0x8] sm:$0xff]
  %v167 = vsel %vm47, %v159, 0
  %v170 = vsel %vm47, %v160, 0
  %v173 = vsel %vm47, %v161, 0
  %v176 = vsel %vm47, %v162, 0
  %178 = vmatpush.msra.mxu0 0.0
  %179 = vmatpush.msra.mxu0 0.0
  %180 = vmatpush.msra.mxu0 0.0
  %181 = vmatpush.msra.mxu0 0.0
  %182 = vmatpush.msra.mxu0 0.0
  %183 = vmatpush.msra.mxu0 0.0
  %184 = vmatpush.msra.mxu0 0.0
  %185 = vmatpush.msra.mxu0 0.0
  %186 = vmatpush.msra.mxu0 0.0
  %187 = vmatpush.msra.mxu0 0.0
  %188 = vmatpush.msra.mxu0 0.0
  %189 = vmatpush.msra.mxu0 0.0
  %190 = vmatpush.msra.mxu0 0.0
  %191 = vmatpush.msra.mxu0 0.0
  %192 = vmatpush.msra.mxu0 %v165
  %193 = vmatpush.msra.mxu0 %v164
  %194 = vmatmul.f32.gmra.mxu0 %v167
  %v195 = vpop.f32.mrf.mxu0
  %v196 = vadd.f32 0.0, %v195
  %197 = vmatmul.f32.gmra.mxu0 %v170
  %v198 = vpop.f32.mrf.mxu0
  %v199 = vadd.f32 0.0, %v198
  %200 = vmatmul.f32.gmra.mxu0 %v173
  %v201 = vpop.f32.mrf.mxu0
  %v202 = vadd.f32 0.0, %v201
  %203 = vmatmul.f32.gmra.mxu0 %v176
  %v204 = vpop.f32.mrf.mxu0
  %v205 = vadd.f32 0.0, %v204
  %206 = vdwg.mxu0
  %v207 = vadd.f32 %v148, %v196
  %v208 = vadd.f32 %v151, %v199
  %v209 = vadd.f32 %v154, %v202
  %v210 = vadd.f32 %v157, %v205
  %s211 = scalar_lea.vmem [#allocation2], 24
  %v212 = vld [vmem:[%s211] sm:$0xff]
  %v213 = vld [vmem:[%s211 + $0x8] sm:$0xff]
  %v214 = vld [vmem:[%s211 + $0x60] sm:$0xff]
  %v215 = vld [vmem:[%s211 + $0x68] sm:$0xff]
  %s216 = scalar_lea.vmem %s1, 48
  %v217 = vld [vmem:[%s216] sm:$0xff]
  %v218 = vld [vmem:[%s216 + $0x8] sm:$0xff]
  %v220 = vsel %vm47, %v212, 0
  %v223 = vsel %vm47, %v213, 0
  %v226 = vsel %vm47, %v214, 0
  %v229 = vsel %vm47, %v215, 0
  %231 = vmatpush.msra.mxu0 0.0
  %232 = vmatpush.msra.mxu0 0.0
  %233 = vmatpush.msra.mxu0 0.0
  %234 = vmatpush.msra.mxu0 0.0
  %235 = vmatpush.msra.mxu0 0.0
  %236 = vmatpush.msra.mxu0 0.0
  %237 = vmatpush.msra.mxu0 0.0
  %238 = vmatpush.msra.mxu0 0.0
  %239 = vmatpush.msra.mxu0 0.0
  %240 = vmatpush.msra.mxu0 0.0
  %241 = vmatpush.msra.mxu0 0.0
  %242 = vmatpush.msra.mxu0 0.0
  %243 = vmatpush.msra.mxu0 0.0
  %244 = vmatpush.msra.mxu0 0.0
  %245 = vmatpush.msra.mxu0 %v218
  %246 = vmatpush.msra.mxu0 %v217
  %247 = vmatmul.f32.gmra.mxu0 %v220
  %v248 = vpop.f32.mrf.mxu0
  %v249 = vadd.f32 0.0, %v248
  %250 = vmatmul.f32.gmra.mxu0 %v223
  %v251 = vpop.f32.mrf.mxu0
  %v252 = vadd.f32 0.0, %v251
  %253 = vmatmul.f32.gmra.mxu0 %v226
  %v254 = vpop.f32.mrf.mxu0
  %v255 = vadd.f32 0.0, %v254
  %256 = vmatmul.f32.gmra.mxu0 %v229
  %v257 = vpop.f32.mrf.mxu0
  %v258 = vadd.f32 0.0, %v257
  %259 = vdwg.mxu0
  %v260 = vadd.f32 %v207, %v249
  %v261 = vadd.f32 %v208, %v252
  %v262 = vadd.f32 %v209, %v255
  %v263 = vadd.f32 %v210, %v258
  %v264 = vld [vmem:[%s211 + $0x1] sm:$0xff]
  %v265 = vld [vmem:[%s211 + $0x9] sm:$0xff]
  %v266 = vld [vmem:[%s211 + $0x61] sm:$0xff]
  %v267 = vld [vmem:[%s211 + $0x69] sm:$0xff]
  %s268 = scalar_lea.vmem %s1, 64
  %v269 = vld [vmem:[%s268] sm:$0xff]
  %v270 = vld [vmem:[%s268 + $0x8] sm:$0xff]
  %v272 = vsel %vm47, %v264, 0
  %v275 = vsel %vm47, %v265, 0
  %v278 = vsel %vm47, %v266, 0
  %v281 = vsel %vm47, %v267, 0
  %283 = vmatpush.msra.mxu0 0.0
  %284 = vmatpush.msra.mxu0 0.0
  %285 = vmatpush.msra.mxu0 0.0
  %286 = vmatpush.msra.mxu0 0.0
  %287 = vmatpush.msra.mxu0 0.0
  %288 = vmatpush.msra.mxu0 0.0
  %289 = vmatpush.msra.mxu0 0.0
  %290 = vmatpush.msra.mxu0 0.0
  %291 = vmatpush.msra.mxu0 0.0
  %292 = vmatpush.msra.mxu0 0.0
  %293 = vmatpush.msra.mxu0 0.0
  %294 = vmatpush.msra.mxu0 0.0
  %295 = vmatpush.msra.mxu0 0.0
  %296 = vmatpush.msra.mxu0 0.0
  %297 = vmatpush.msra.mxu0 %v270
  %298 = vmatpush.msra.mxu0 %v269
  %299 = vmatmul.f32.gmra.mxu0 %v272
  %v300 = vpop.f32.mrf.mxu0
  %v301 = vadd.f32 0.0, %v300
  %302 = vmatmul.f32.gmra.mxu0 %v275
  %v303 = vpop.f32.mrf.mxu0
  %v304 = vadd.f32 0.0, %v303
  %305 = vmatmul.f32.gmra.mxu0 %v278
  %v306 = vpop.f32.mrf.mxu0
  %v307 = vadd.f32 0.0, %v306
  %308 = vmatmul.f32.gmra.mxu0 %v281
  %v309 = vpop.f32.mrf.mxu0
  %v310 = vadd.f32 0.0, %v309
  %311 = vdwg.mxu0
  %v312 = vadd.f32 %v260, %v301
  %v313 = vadd.f32 %v261, %v304
  %v314 = vadd.f32 %v262, %v307
  %v315 = vadd.f32 %v263, %v310
  %v316 = vld [vmem:[%s211 + $0x2] sm:$0xff]
  %v317 = vld [vmem:[%s211 + $0xa] sm:$0xff]
  %v318 = vld [vmem:[%s211 + $0x62] sm:$0xff]
  %v319 = vld [vmem:[%s211 + $0x6a] sm:$0xff]
  %s320 = scalar_lea.vmem %s1, 80
  %v321 = vld [vmem:[%s320] sm:$0xff]
  %v322 = vld [vmem:[%s320 + $0x8] sm:$0xff]
  %v324 = vsel %vm47, %v316, 0
  %v327 = vsel %vm47, %v317, 0
  %v330 = vsel %vm47, %v318, 0
  %v333 = vsel %vm47, %v319, 0
  %335 = vmatpush.msra.mxu0 0.0
  %336 = vmatpush.msra.mxu0 0.0
  %337 = vmatpush.msra.mxu0 0.0
  %338 = vmatpush.msra.mxu0 0.0
  %339 = vmatpush.msra.mxu0 0.0
  %340 = vmatpush.msra.mxu0 0.0
  %341 = vmatpush.msra.mxu0 0.0
  %342 = vmatpush.msra.mxu0 0.0
  %343 = vmatpush.msra.mxu0 0.0
  %344 = vmatpush.msra.mxu0 0.0
  %345 = vmatpush.msra.mxu0 0.0
  %346 = vmatpush.msra.mxu0 0.0
  %347 = vmatpush.msra.mxu0 0.0
  %348 = vmatpush.msra.mxu0 0.0
  %349 = vmatpush.msra.mxu0 %v322
  %350 = vmatpush.msra.mxu0 %v321
  %351 = vmatmul.f32.gmra.mxu0 %v324
  %v352 = vpop.f32.mrf.mxu0
  %v353 = vadd.f32 0.0, %v352
  %354 = vmatmul.f32.gmra.mxu0 %v327
  %v355 = vpop.f32.mrf.mxu0
  %v356 = vadd.f32 0.0, %v355
  %357 = vmatmul.f32.gmra.mxu0 %v330
  %v358 = vpop.f32.mrf.mxu0
  %v359 = vadd.f32 0.0, %v358
  %360 = vmatmul.f32.gmra.mxu0 %v333
  %v361 = vpop.f32.mrf.mxu0
  %v362 = vadd.f32 0.0, %v361
  %363 = vdwg.mxu0
  %v364 = vadd.f32 %v312, %v353
  %v365 = vadd.f32 %v313, %v356
  %v366 = vadd.f32 %v314, %v359
  %v367 = vadd.f32 %v315, %v362
  %s368 = scalar_lea.vmem [#allocation2], 48
  %v369 = vld [vmem:[%s368] sm:$0xff]
  %v370 = vld [vmem:[%s368 + $0x8] sm:$0xff]
  %v371 = vld [vmem:[%s368 + $0x60] sm:$0xff]
  %v372 = vld [vmem:[%s368 + $0x68] sm:$0xff]
  %s373 = scalar_lea.vmem %s1, 96
  %v374 = vld [vmem:[%s373] sm:$0xff]
  %v375 = vld [vmem:[%s373 + $0x8] sm:$0xff]
  %v377 = vsel %vm47, %v369, 0
  %v380 = vsel %vm47, %v370, 0
  %v383 = vsel %vm47, %v371, 0
  %v386 = vsel %vm47, %v372, 0
  %388 = vmatpush.msra.mxu0 0.0
  %389 = vmatpush.msra.mxu0 0.0
  %390 = vmatpush.msra.mxu0 0.0
  %391 = vmatpush.msra.mxu0 0.0
  %392 = vmatpush.msra.mxu0 0.0
  %393 = vmatpush.msra.mxu0 0.0
  %394 = vmatpush.msra.mxu0 0.0
  %395 = vmatpush.msra.mxu0 0.0
  %396 = vmatpush.msra.mxu0 0.0
  %397 = vmatpush.msra.mxu0 0.0
  %398 = vmatpush.msra.mxu0 0.0
  %399 = vmatpush.msra.mxu0 0.0
  %400 = vmatpush.msra.mxu0 0.0
  %401 = vmatpush.msra.mxu0 0.0
  %402 = vmatpush.msra.mxu0 %v375
  %403 = vmatpush.msra.mxu0 %v374
  %404 = vmatmul.f32.gmra.mxu0 %v377
  %v405 = vpop.f32.mrf.mxu0
  %v406 = vadd.f32 0.0, %v405
  %407 = vmatmul.f32.gmra.mxu0 %v380
  %v408 = vpop.f32.mrf.mxu0
  %v409 = vadd.f32 0.0, %v408
  %410 = vmatmul.f32.gmra.mxu0 %v383
  %v411 = vpop.f32.mrf.mxu0
  %v412 = vadd.f32 0.0, %v411
  %413 = vmatmul.f32.gmra.mxu0 %v386
  %v414 = vpop.f32.mrf.mxu0
  %v415 = vadd.f32 0.0, %v414
  %416 = vdwg.mxu0
  %v417 = vadd.f32 %v364, %v406
  %v418 = vadd.f32 %v365, %v409
  %v419 = vadd.f32 %v366, %v412
  %v420 = vadd.f32 %v367, %v415
  %v421 = vld [vmem:[%s368 + $0x1] sm:$0xff]
  %v422 = vld [vmem:[%s368 + $0x9] sm:$0xff]
  %v423 = vld [vmem:[%s368 + $0x61] sm:$0xff]
  %v424 = vld [vmem:[%s368 + $0x69] sm:$0xff]
  %s425 = scalar_lea.vmem %s1, 112
  %v426 = vld [vmem:[%s425] sm:$0xff]
  %v427 = vld [vmem:[%s425 + $0x8] sm:$0xff]
  %v429 = vsel %vm47, %v421, 0
  %v432 = vsel %vm47, %v422, 0
  %v435 = vsel %vm47, %v423, 0
  %v438 = vsel %vm47, %v424, 0
  %440 = vmatpush.msra.mxu0 0.0
  %441 = vmatpush.msra.mxu0 0.0
  %442 = vmatpush.msra.mxu0 0.0
  %443 = vmatpush.msra.mxu0 0.0
  %444 = vmatpush.msra.mxu0 0.0
  %445 = vmatpush.msra.mxu0 0.0
  %446 = vmatpush.msra.mxu0 0.0
  %447 = vmatpush.msra.mxu0 0.0
  %448 = vmatpush.msra.mxu0 0.0
  %449 = vmatpush.msra.mxu0 0.0
  %450 = vmatpush.msra.mxu0 0.0
  %451 = vmatpush.msra.mxu0 0.0
  %452 = vmatpush.msra.mxu0 0.0
  %453 = vmatpush.msra.mxu0 0.0
  %454 = vmatpush.msra.mxu0 %v427
  %455 = vmatpush.msra.mxu0 %v426
  %456 = vmatmul.f32.gmra.mxu0 %v429
  %v457 = vpop.f32.mrf.mxu0
  %v458 = vadd.f32 0.0, %v457
  %459 = vmatmul.f32.gmra.mxu0 %v432
  %v460 = vpop.f32.mrf.mxu0
  %v461 = vadd.f32 0.0, %v460
  %462 = vmatmul.f32.gmra.mxu0 %v435
  %v463 = vpop.f32.mrf.mxu0
  %v464 = vadd.f32 0.0, %v463
  %465 = vmatmul.f32.gmra.mxu0 %v438
  %v466 = vpop.f32.mrf.mxu0
  %v467 = vadd.f32 0.0, %v466
  %468 = vdwg.mxu0
  %v469 = vadd.f32 %v417, %v458
  %v470 = vadd.f32 %v418, %v461
  %v471 = vadd.f32 %v419, %v464
  %v472 = vadd.f32 %v420, %v467
  %v473 = vld [vmem:[%s368 + $0x2] sm:$0xff]
  %v474 = vld [vmem:[%s368 + $0xa] sm:$0xff]
  %v475 = vld [vmem:[%s368 + $0x62] sm:$0xff]
  %v476 = vld [vmem:[%s368 + $0x6a] sm:$0xff]
  %s477 = scalar_lea.vmem %s1, 128
  %v478 = vld [vmem:[%s477] sm:$0xff]
  %v479 = vld [vmem:[%s477 + $0x8] sm:$0xff]
  %v481 = vsel %vm47, %v473, 0
  %v484 = vsel %vm47, %v474, 0
  %v487 = vsel %vm47, %v475, 0
  %v490 = vsel %vm47, %v476, 0
  %492 = vmatpush.msra.mxu0 0.0
  %493 = vmatpush.msra.mxu0 0.0
  %494 = vmatpush.msra.mxu0 0.0
  %495 = vmatpush.msra.mxu0 0.0
  %496 = vmatpush.msra.mxu0 0.0
  %497 = vmatpush.msra.mxu0 0.0
  %498 = vmatpush.msra.mxu0 0.0
  %499 = vmatpush.msra.mxu0 0.0
  %500 = vmatpush.msra.mxu0 0.0
  %501 = vmatpush.msra.mxu0 0.0
  %502 = vmatpush.msra.mxu0 0.0
  %503 = vmatpush.msra.mxu0 0.0
  %504 = vmatpush.msra.mxu0 0.0
  %505 = vmatpush.msra.mxu0 0.0
  %506 = vmatpush.msra.mxu0 %v479
  %507 = vmatpush.msra.mxu0 %v478
  %508 = vmatmul.f32.gmra.mxu0 %v481
  %v509 = vpop.f32.mrf.mxu0
  %v510 = vadd.f32 0.0, %v509
  %511 = vmatmul.f32.gmra.mxu0 %v484
  %v512 = vpop.f32.mrf.mxu0
  %v513 = vadd.f32 0.0, %v512
  %514 = vmatmul.f32.gmra.mxu0 %v487
  %v515 = vpop.f32.mrf.mxu0
  %v516 = vadd.f32 0.0, %v515
  %517 = vmatmul.f32.gmra.mxu0 %v490
  %v518 = vpop.f32.mrf.mxu0
  %v519 = vadd.f32 0.0, %v518
  %520 = vdwg.mxu0
  %v521 = vadd.f32 %v469, %v510
  %v522 = vadd.f32 %v470, %v513
  %v523 = vadd.f32 %v471, %v516
  %v524 = vadd.f32 %v472, %v519
  %s525 = scalar_lea.vmem [#allocation2], 72
  %v526 = vld [vmem:[%s525] sm:$0xff]
  %v527 = vld [vmem:[%s525 + $0x8] sm:$0xff]
  %v528 = vld [vmem:[%s525 + $0x60] sm:$0xff]
  %v529 = vld [vmem:[%s525 + $0x68] sm:$0xff]
  %s530 = scalar_lea.vmem %s1, 144
  %v531 = vld [vmem:[%s530] sm:$0xff]
  %v532 = vld [vmem:[%s530 + $0x8] sm:$0xff]
  %v534 = vsel %vm47, %v526, 0
  %v537 = vsel %vm47, %v527, 0
  %v540 = vsel %vm47, %v528, 0
  %v543 = vsel %vm47, %v529, 0
  %545 = vmatpush.msra.mxu0 0.0
  %546 = vmatpush.msra.mxu0 0.0
  %547 = vmatpush.msra.mxu0 0.0
  %548 = vmatpush.msra.mxu0 0.0
  %549 = vmatpush.msra.mxu0 0.0
  %550 = vmatpush.msra.mxu0 0.0
  %551 = vmatpush.msra.mxu0 0.0
  %552 = vmatpush.msra.mxu0 0.0
  %553 = vmatpush.msra.mxu0 0.0
  %554 = vmatpush.msra.mxu0 0.0
  %555 = vmatpush.msra.mxu0 0.0
  %556 = vmatpush.msra.mxu0 0.0
  %557 = vmatpush.msra.mxu0 0.0
  %558 = vmatpush.msra.mxu0 0.0
  %559 = vmatpush.msra.mxu0 %v532
  %560 = vmatpush.msra.mxu0 %v531
  %561 = vmatmul.f32.gmra.mxu0 %v534
  %v562 = vpop.f32.mrf.mxu0
  %v563 = vadd.f32 0.0, %v562
  %564 = vmatmul.f32.gmra.mxu0 %v537
  %v565 = vpop.f32.mrf.mxu0
  %v566 = vadd.f32 0.0, %v565
  %567 = vmatmul.f32.gmra.mxu0 %v540
  %v568 = vpop.f32.mrf.mxu0
  %v569 = vadd.f32 0.0, %v568
  %570 = vmatmul.f32.gmra.mxu0 %v543
  %v571 = vpop.f32.mrf.mxu0
  %v572 = vadd.f32 0.0, %v571
  %573 = vdwg.mxu0
  %v574 = vadd.f32 %v521, %v563
  %v575 = vadd.f32 %v522, %v566
  %v576 = vadd.f32 %v523, %v569
  %v577 = vadd.f32 %v524, %v572
  %v578 = vld [vmem:[%s525 + $0x1] sm:$0xff]
  %v579 = vld [vmem:[%s525 + $0x9] sm:$0xff]
  %v580 = vld [vmem:[%s525 + $0x61] sm:$0xff]
  %v581 = vld [vmem:[%s525 + $0x69] sm:$0xff]
  %s582 = scalar_lea.vmem %s1, 160
  %v583 = vld [vmem:[%s582] sm:$0xff]
  %v584 = vld [vmem:[%s582 + $0x8] sm:$0xff]
  %v586 = vsel %vm47, %v578, 0
  %v589 = vsel %vm47, %v579, 0
  %v592 = vsel %vm47, %v580, 0
  %v595 = vsel %vm47, %v581, 0
  %597 = vmatpush.msra.mxu0 0.0
  %598 = vmatpush.msra.mxu0 0.0
  %599 = vmatpush.msra.mxu0 0.0
  %600 = vmatpush.msra.mxu0 0.0
  %601 = vmatpush.msra.mxu0 0.0
  %602 = vmatpush.msra.mxu0 0.0
  %603 = vmatpush.msra.mxu0 0.0
  %604 = vmatpush.msra.mxu0 0.0
  %605 = vmatpush.msra.mxu0 0.0
  %606 = vmatpush.msra.mxu0 0.0
  %607 = vmatpush.msra.mxu0 0.0
  %608 = vmatpush.msra.mxu0 0.0
  %609 = vmatpush.msra.mxu0 0.0
  %610 = vmatpush.msra.mxu0 0.0
  %611 = vmatpush.msra.mxu0 %v584
  %612 = vmatpush.msra.mxu0 %v583
  %613 = vmatmul.f32.gmra.mxu0 %v586
  %v614 = vpop.f32.mrf.mxu0
  %v615 = vadd.f32 0.0, %v614
  %616 = vmatmul.f32.gmra.mxu0 %v589
  %v617 = vpop.f32.mrf.mxu0
  %v618 = vadd.f32 0.0, %v617
  %619 = vmatmul.f32.gmra.mxu0 %v592
  %v620 = vpop.f32.mrf.mxu0
  %v621 = vadd.f32 0.0, %v620
  %622 = vmatmul.f32.gmra.mxu0 %v595
  %v623 = vpop.f32.mrf.mxu0
  %v624 = vadd.f32 0.0, %v623
  %625 = vdwg.mxu0
  %v626 = vadd.f32 %v574, %v615
  %v627 = vadd.f32 %v575, %v618
  %v628 = vadd.f32 %v576, %v621
  %v629 = vadd.f32 %v577, %v624
  %v630 = vld [vmem:[%s525 + $0x2] sm:$0xff]
  %v631 = vld [vmem:[%s525 + $0xa] sm:$0xff]
  %v632 = vld [vmem:[%s525 + $0x62] sm:$0xff]
  %v633 = vld [vmem:[%s525 + $0x6a] sm:$0xff]
  %s634 = scalar_lea.vmem %s1, 176
  %v635 = vld [vmem:[%s634] sm:$0xff]
  %v636 = vld [vmem:[%s634 + $0x8] sm:$0xff]
  %v638 = vsel %vm47, %v630, 0
  %v641 = vsel %vm47, %v631, 0
  %v644 = vsel %vm47, %v632, 0
  %v647 = vsel %vm47, %v633, 0
  %649 = vmatpush.msra.mxu0 0.0
  %650 = vmatpush.msra.mxu0 0.0
  %651 = vmatpush.msra.mxu0 0.0
  %652 = vmatpush.msra.mxu0 0.0
  %653 = vmatpush.msra.mxu0 0.0
  %654 = vmatpush.msra.mxu0 0.0
  %655 = vmatpush.msra.mxu0 0.0
  %656 = vmatpush.msra.mxu0 0.0
  %657 = vmatpush.msra.mxu0 0.0
  %658 = vmatpush.msra.mxu0 0.0
  %659 = vmatpush.msra.mxu0 0.0
  %660 = vmatpush.msra.mxu0 0.0
  %661 = vmatpush.msra.mxu0 0.0
  %662 = vmatpush.msra.mxu0 0.0
  %663 = vmatpush.msra.mxu0 %v636
  %664 = vmatpush.msra.mxu0 %v635
  %665 = vmatmul.f32.gmra.mxu0 %v638
  %v666 = vpop.f32.mrf.mxu0
  %v667 = vadd.f32 0.0, %v666
  %668 = vmatmul.f32.gmra.mxu0 %v641
  %v669 = vpop.f32.mrf.mxu0
  %v670 = vadd.f32 0.0, %v669
  %671 = vmatmul.f32.gmra.mxu0 %v644
  %v672 = vpop.f32.mrf.mxu0
  %v673 = vadd.f32 0.0, %v672
  %674 = vmatmul.f32.gmra.mxu0 %v647
  %v675 = vpop.f32.mrf.mxu0
  %v676 = vadd.f32 0.0, %v675
  %677 = vdwg.mxu0
  %v678 = vadd.f32 %v626, %v667
  %v679 = vadd.f32 %v627, %v670
  %v680 = vadd.f32 %v628, %v673
  %v681 = vadd.f32 %v629, %v676
  %v682 = vld [vmem:[%s2] sm:$0x1]
  %v684 = vperm.slane %v682, 0
  %v686 = vadd.f32 %v678, %v684
  %v687 = vadd.f32 %v679, %v684
  %v688 = vadd.f32 %v680, %v684
  %v689 = vadd.f32 %v681, %v684
  %v690 = vmax.f32 %v686, 0.0
  %v691 = vmax.f32 %v687, 0.0
  %v692 = vmax.f32 %v688, 0.0
  %v693 = vmax.f32 %v689, 0.0
  %694 = vst [vmem:[%s3] sm:$0xff] %v690
  %695 = vst [vmem:[%s3 + $0x8] sm:$0xff] %v691
  %696 = vst [vmem:[%s3 + $0x10] sm:$0xff] %v692
  %697 = vst [vmem:[%s3 + $0x18] sm:$0xff] %v693
  // Predicated region
  $region14: #{conv2d_block_forward.1} parent=0 // pred_check
    _
  $region15: #{conv2d_block_forward.1} parent=0 // pred_check_branch
    %699 = sbr.rel (0) target = $region17
  $region16: #{conv2d_block_forward.1} parent=0 // pred_region
    _
  $region17: #{conv2d_block_forward.1} parent=0 // pred_fallthru
    _
  // Predicated region
  $region18: #{conv2d_block_forward.1} parent=0 // pred_check
    _
  $region19: #{conv2d_block_forward.1} parent=0 // pred_check_branch
    %701 = sbr.rel (0) target = $region21
  $region20: #{conv2d_block_forward.1} parent=0 // pred_region
    _
  $region21: #{conv2d_block_forward.1} parent=0 // pred_fallthru
    _

</llo_original>
